<compile_context>
chip_gen: v7x
topology: tpu7x:2x2x1
jax: 0.10.0
libtpu: 0.0.40
codegen_flags: <defaults>
</compile_context>

<pallas_src>
import jax
import jax.numpy as jnp
from jax.experimental import pallas as pl
from jax.experimental.pallas import tpu as pltpu

IN = 2
H1, H2, OUT = 200, 300, 5
H1P, H2P, OUTP = 256, 384, 128   # lane-aligned (multiple of 128) padded dims


def dqn_mlp_kernel(x_ref, w1_ref, b1_ref, w2_ref, b2_ref, w3_ref, b3_ref, o_ref):
    x = x_ref[...]                       # (TB, 2)
    w1 = w1_ref[...]                     # (2, H1P)
    # fc1: K=2 is too shallow for the MXU -> two VPU broadcast-FMAs + bias, then ReLU
    h1 = x[:, 0:1] * w1[0:1, :] + x[:, 1:2] * w1[1:2, :] + b1_ref[...]
    h1 = jnp.maximum(h1, 0.0)
    # fc2 + ReLU (MXU, 128-aligned K/N)
    h2 = jnp.dot(h1, w2_ref[...], preferred_element_type=jnp.float32) + b2_ref[...]
    h2 = jnp.maximum(h2, 0.0)
    # fc3 (no activation)
    out = jnp.dot(h2, w3_ref[...], preferred_element_type=jnp.float32) + b3_ref[...]
    o_ref[...] = out.astype(o_ref.dtype)


def pad_params(params):
    """Zero-pad weights/biases to lane-aligned shapes exactly once (outside the kernel)."""
    w1, b1, w2, b2, w3, b3 = params
    w1p = jnp.zeros((IN, H1P), jnp.float32).at[:, :H1].set(w1)
    b1p = jnp.zeros((1, H1P), jnp.float32).at[:, :H1].set(b1)
    w2p = jnp.zeros((H1P, H2P), jnp.float32).at[:H1, :H2].set(w2)
    b2p = jnp.zeros((1, H2P), jnp.float32).at[:, :H2].set(b2)
    w3p = jnp.zeros((H2P, OUTP), jnp.float32).at[:H2, :OUT].set(w3)
    b3p = jnp.zeros((1, OUTP), jnp.float32).at[:, :OUT].set(b3)
    return (w1p, b1p, w2p, b2p, w3p, b3p)


def dqn_forward(x, padded_params):
    w1, b1, w2, b2, w3, b3 = padded_params
    B = x.shape[0]

    # Batch tiling: 8-aligned tile of at most 256 rows; pad batch up to a tile multiple.
    TB = min(256, -(-B // 8) * 8)
    Bp = -(-B // TB) * TB
    if Bp != B:
        x = jnp.zeros((Bp, IN), x.dtype).at[:B, :].set(x)
    grid = (Bp // TB,)

    flops = 2 * Bp * (IN * H1P + H1P * H2P + H2P * OUTP)
    bytes_accessed = 4 * (Bp * IN + Bp * OUTP
                          + IN * H1P + H1P
                          + H1P * H2P + H2P
                          + H2P * OUTP + OUTP)

    out = pl.pallas_call(
        dqn_mlp_kernel,
        out_shape=jax.ShapeDtypeStruct((Bp, OUTP), jnp.float32),
        grid=grid,
        in_specs=[
            pl.BlockSpec((TB, IN), lambda i: (i, 0)),      # x: tiled over batch
            pl.BlockSpec((IN, H1P), lambda i: (0, 0)),     # weights/biases: VMEM-resident
            pl.BlockSpec((1, H1P), lambda i: (0, 0)),
            pl.BlockSpec((H1P, H2P), lambda i: (0, 0)),
            pl.BlockSpec((1, H2P), lambda i: (0, 0)),
            pl.BlockSpec((H2P, OUTP), lambda i: (0, 0)),
            pl.BlockSpec((1, OUTP), lambda i: (0, 0)),
        ],
        out_specs=pl.BlockSpec((TB, OUTP), lambda i: (i, 0)),
        compiler_params=pltpu.CompilerParams(
            dimension_semantics=("parallel",)),            # v7x: shard batch over 2 TCs
        cost_estimate=pl.CostEstimate(
            flops=flops, transcendentals=0, bytes_accessed=bytes_accessed),
    )(x, w1, b1, w2, b2, w3, b3)

    # Slice away batch + lane padding outside the kernel.
    return out[:B, :OUT]


def init_params(key):
    """Deterministic init mimicking PyTorch nn.Linear default (U[-1/sqrt(fan_in), +1/sqrt(fan_in)])."""
    dims = [(IN, H1), (H1, H2), (H2, OUT)]
    params = []
    for fan_in, fan_out in dims:
        kw, kb, key = jax.random.split(key, 3)
        bound = 1.0 / (fan_in ** 0.5)
        w = jax.random.uniform(kw, (fan_in, fan_out), jnp.float32, -bound, bound)
        b = jax.random.uniform(kb, (1, fan_out), jnp.float32, -bound, bound)
        params.extend([w, b])
    return tuple(params)


def dqn_reference(x, params):
    w1, b1, w2, b2, w3, b3 = params
    h1 = jnp.maximum(x @ w1 + b1, 0.0)
    h2 = jnp.maximum(h1 @ w2 + b2, 0.0)
    return h2 @ w3 + b3


if __name__ == "__main__":
    key = jax.random.PRNGKey(0)
    kx, kp = jax.random.split(key)
    B = 8
    x = jax.random.normal(kx, (B, IN), jnp.float32)
    params = init_params(kp)
    padded = pad_params(params)

    out = dqn_forward(x, padded)
    out = jax.block_until_ready(out)

    ref = dqn_reference(x, params)
    assert out.shape == (B, OUT)
    assert jnp.allclose(out, ref, atol=1e-4, rtol=1e-4), "mismatch vs reference"
    print("KERNEL_OK")
</pallas_src>

<mosaic_0001>
module attributes {stable_mosaic.version = 11 : i64} {
  func.func @dqn_mlp_kernel(%arg0: i32, %arg1: memref<8x2xf32, #tpu.memory_space<vmem>>, %arg2: memref<2x256xf32, #tpu.memory_space<vmem>>, %arg3: memref<1x256xf32, #tpu.memory_space<vmem>>, %arg4: memref<256x384xf32, #tpu.memory_space<vmem>>, %arg5: memref<1x384xf32, #tpu.memory_space<vmem>>, %arg6: memref<384x128xf32, #tpu.memory_space<vmem>>, %arg7: memref<1x128xf32, #tpu.memory_space<vmem>>, %arg8: memref<8x128xf32, #tpu.memory_space<vmem>>) attributes {dimension_semantics = [#tpu.dimension_semantics<parallel>], iteration_bounds = array<i64: 1>, scalar_prefetch = 0 : i64, scratch_operands = 0 : i64, tpu.core_type = #tpu.core_type<tc>, window_params = [{transform_indices = @transform_0, window_bounds = array<i64: 8, 2>}, {pipeline_mode = #tpu.pipeline_mode<synchronous>, transform_indices = @transform_1, window_bounds = array<i64: 2, 256>}, {pipeline_mode = #tpu.pipeline_mode<synchronous>, transform_indices = @transform_2, window_bounds = array<i64: 1, 256>}, {pipeline_mode = #tpu.pipeline_mode<synchronous>, transform_indices = @transform_3, window_bounds = array<i64: 256, 384>}, {pipeline_mode = #tpu.pipeline_mode<synchronous>, transform_indices = @transform_4, window_bounds = array<i64: 1, 384>}, {pipeline_mode = #tpu.pipeline_mode<synchronous>, transform_indices = @transform_5, window_bounds = array<i64: 384, 128>}, {pipeline_mode = #tpu.pipeline_mode<synchronous>, transform_indices = @transform_6, window_bounds = array<i64: 1, 128>}, {transform_indices = @transform_7, window_bounds = array<i64: 8, 128>}]} {
    %c0 = arith.constant 0 : index
    %c0_0 = arith.constant 0 : index
    %0 = vector.load %arg1[%c0, %c0_0] : memref<8x2xf32, #tpu.memory_space<vmem>>, vector<8x2xf32>
    %c0_1 = arith.constant 0 : index
    %c0_2 = arith.constant 0 : index
    %1 = vector.load %arg2[%c0_1, %c0_2] : memref<2x256xf32, #tpu.memory_space<vmem>>, vector<2x256xf32>
    %2 = vector.extract_strided_slice %0 {offsets = [0, 0], sizes = [8, 1], strides = [1, 1]} : vector<8x2xf32> to vector<8x1xf32>
    %3 = vector.extract_strided_slice %1 {offsets = [0, 0], sizes = [1, 256], strides = [1, 1]} : vector<2x256xf32> to vector<1x256xf32>
    %4 = vector.broadcast %2 : vector<8x1xf32> to vector<8x256xf32>
    %5 = vector.broadcast %3 : vector<1x256xf32> to vector<8x256xf32>
    %6 = arith.mulf %4, %5 : vector<8x256xf32>
    %7 = vector.extract_strided_slice %0 {offsets = [0, 1], sizes = [8, 1], strides = [1, 1]} : vector<8x2xf32> to vector<8x1xf32>
    %8 = vector.extract_strided_slice %1 {offsets = [1, 0], sizes = [1, 256], strides = [1, 1]} : vector<2x256xf32> to vector<1x256xf32>
    %9 = vector.broadcast %7 : vector<8x1xf32> to vector<8x256xf32>
    %10 = vector.broadcast %8 : vector<1x256xf32> to vector<8x256xf32>
    %11 = arith.mulf %9, %10 : vector<8x256xf32>
    %12 = arith.addf %6, %11 : vector<8x256xf32>
    %c0_3 = arith.constant 0 : index
    %c0_4 = arith.constant 0 : index
    %13 = vector.load %arg3[%c0_3, %c0_4] : memref<1x256xf32, #tpu.memory_space<vmem>>, vector<1x256xf32>
    %14 = vector.broadcast %13 : vector<1x256xf32> to vector<8x256xf32>
    %15 = arith.addf %12, %14 : vector<8x256xf32>
    %cst = arith.constant 0.000000e+00 : f32
    %16 = vector.broadcast %cst : f32 to vector<8x256xf32>
    %17 = arith.maximumf %15, %16 : vector<8x256xf32>
    %c0_5 = arith.constant 0 : index
    %c0_6 = arith.constant 0 : index
    %18 = vector.load %arg4[%c0_5, %c0_6] : memref<256x384xf32, #tpu.memory_space<vmem>>, vector<256x384xf32>
    %cst_7 = arith.constant dense<0.000000e+00> : vector<8x384xf32>
    %19 = tpu.matmul %17, %18, %cst_7 {dimension_numbers = #tpu.dot_dimension_numbers<[1], [0], [0], [1], [0, 0, 1, 1], [], []>} : vector<8x256xf32>, vector<256x384xf32>, vector<8x384xf32> -> vector<8x384xf32>
    %c0_8 = arith.constant 0 : index
    %c0_9 = arith.constant 0 : index
    %20 = vector.load %arg5[%c0_8, %c0_9] : memref<1x384xf32, #tpu.memory_space<vmem>>, vector<1x384xf32>
    %21 = vector.broadcast %20 : vector<1x384xf32> to vector<8x384xf32>
    %22 = arith.addf %19, %21 : vector<8x384xf32>
    %cst_10 = arith.constant 0.000000e+00 : f32
    %23 = vector.broadcast %cst_10 : f32 to vector<8x384xf32>
    %24 = arith.maximumf %22, %23 : vector<8x384xf32>
    %c0_11 = arith.constant 0 : index
    %c0_12 = arith.constant 0 : index
    %25 = vector.load %arg6[%c0_11, %c0_12] : memref<384x128xf32, #tpu.memory_space<vmem>>, vector<384x128xf32>
    %cst_13 = arith.constant dense<0.000000e+00> : vector<8x128xf32>
    %26 = tpu.matmul %24, %25, %cst_13 {dimension_numbers = #tpu.dot_dimension_numbers<[1], [0], [0], [1], [0, 0, 1, 1], [], []>} : vector<8x384xf32>, vector<384x128xf32>, vector<8x128xf32> -> vector<8x128xf32>
    %c0_14 = arith.constant 0 : index
    %c0_15 = arith.constant 0 : index
    %27 = vector.load %arg7[%c0_14, %c0_15] : memref<1x128xf32, #tpu.memory_space<vmem>>, vector<1x128xf32>
    %28 = vector.broadcast %27 : vector<1x128xf32> to vector<8x128xf32>
    %29 = arith.addf %26, %28 : vector<8x128xf32>
    %c0_16 = arith.constant 0 : index
    %c0_17 = arith.constant 0 : index
    %30 = vector.load %arg8[%c0_16, %c0_17] : memref<8x128xf32, #tpu.memory_space<vmem>>, vector<8x128xf32>
    tpu.vector_store %arg8[%c0_16, %c0_17], %29 {strides = array<i32>} : memref<8x128xf32, #tpu.memory_space<vmem>>, vector<8x128xf32>,
    return
  }
  func.func @transform_0(%arg0: i32) -> (i32, i32) {
    %c0_i32 = arith.constant 0 : i32
    %c0_i32_0 = arith.constant 0 : i32
    return %arg0, %c0_i32 : i32, i32
  }
  func.func @transform_1(%arg0: i32) -> (i32, i32) {
    %c0_i32 = arith.constant 0 : i32
    %c0_i32_0 = arith.constant 0 : i32
    %c0_i32_1 = arith.constant 0 : i32
    return %c0_i32, %c0_i32_0 : i32, i32
  }
  func.func @transform_2(%arg0: i32) -> (i32, i32) {
    %c0_i32 = arith.constant 0 : i32
    %c0_i32_0 = arith.constant 0 : i32
    %c0_i32_1 = arith.constant 0 : i32
    return %c0_i32, %c0_i32_0 : i32, i32
  }
  func.func @transform_3(%arg0: i32) -> (i32, i32) {
    %c0_i32 = arith.constant 0 : i32
    %c0_i32_0 = arith.constant 0 : i32
    %c0_i32_1 = arith.constant 0 : i32
    return %c0_i32, %c0_i32_0 : i32, i32
  }
  func.func @transform_4(%arg0: i32) -> (i32, i32) {
    %c0_i32 = arith.constant 0 : i32
    %c0_i32_0 = arith.constant 0 : i32
    %c0_i32_1 = arith.constant 0 : i32
    return %c0_i32, %c0_i32_0 : i32, i32
  }
  func.func @transform_5(%arg0: i32) -> (i32, i32) {
    %c0_i32 = arith.constant 0 : i32
    %c0_i32_0 = arith.constant 0 : i32
    %c0_i32_1 = arith.constant 0 : i32
    return %c0_i32, %c0_i32_0 : i32, i32
  }
  func.func @transform_6(%arg0: i32) -> (i32, i32) {
    %c0_i32 = arith.constant 0 : i32
    %c0_i32_0 = arith.constant 0 : i32
    %c0_i32_1 = arith.constant 0 : i32
    return %c0_i32, %c0_i32_0 : i32, i32
  }
  func.func @transform_7(%arg0: i32) -> (i32, i32) {
    %c0_i32 = arith.constant 0 : i32
    %c0_i32_0 = arith.constant 0 : i32
    return %arg0, %c0_i32 : i32, i32
  }
}

</mosaic_0001>

<llo_original>
// kernel: tpu_custom_call.1
$region0: #{tpu_custom_call.1}
  #allocation0 [shape = 'u32[]', space=smem, size = 0x4, offset = 0x4, fixed_abs, tag = 'smem constant byte address 0x4 - core index']
  #allocation1 [shape = 'u32[144,128]{1,0:T(1,128)}', space=vmem, size = 0x12000, scoped, tag = 'internal scratch']
  %s0 = inlined_call_operand.vmem [shape: f32[8,2], index: 0, kind: input, shape index: {}]
  %s1 = inlined_call_operand.vmem [shape: f32[2,256], index: 1, kind: input, shape index: {}]
  %s2 = inlined_call_operand.vmem [shape: f32[1,256], index: 2, kind: input, shape index: {}]
  %s3 = inlined_call_operand.hbm [shape: f32[256,384], index: 3, kind: input, shape index: {}]
  %s4 = inlined_call_operand.vmem [shape: f32[1,384], index: 4, kind: input, shape index: {}]
  %s5 = inlined_call_operand.hbm [shape: f32[384,128], index: 5, kind: input, shape index: {}]
  %s6 = inlined_call_operand.vmem [shape: f32[1,128], index: 6, kind: input, shape index: {}]
  %s7 = inlined_call_operand.hbm [shape: f32[8,128], index: 7, kind: output, shape index: {}]
  %s8 = sld [smem:[#allocation0]]
  $region46: #{tpu_custom_call.1} parent=0
    _
  %s10 = ssub.s32 1, %s8
  %s11 = scalar_select 0, %s10, %s8
  $region1: #{tpu_custom_call.1} parent=0
    #allocation2 [shape = 'u8[393216]{0}', space=vmem, size = 0x60000, scoped, tag = 'input window, operand 3, single buffered']
    #allocation3 [shape = 's32[1]{0}', space=sflag, size = 0x4, scoped, tag = 'scoped memory for tpu_custom_call.1']
    #allocation4 [shape = 's32[1]{0}', space=sflag, size = 0x4, scoped, tag = 'scoped memory for tpu_custom_call.1']
    #allocation5 [shape = 'u8[196608]{0}', space=vmem, size = 0x30000, scoped, tag = 'input window, operand 5, single buffered']
    #allocation6 [shape = 's32[1]{0}', space=sflag, size = 0x4, scoped, tag = 'scoped memory for tpu_custom_call.1']
    #allocation7 [shape = 'u8[4096]{0}', space=vmem, size = 0x1000, scoped, tag = 'output window, operand 0, single buffered']
    %12 = vsyncpa [#allocation3], 0
    %13 = vsyncpa [#allocation6], 0
    %14 = vsyncpa [#allocation4], 0
    // Predicated region
    $region2: #{tpu_custom_call.1} parent=1 // pred_check
      _
    $region3: #{tpu_custom_call.1} parent=1 // pred_check_branch
      %16 = sbr.rel (0) target = $region5
    $region4: #{tpu_custom_call.1} parent=1 // pred_region
      _
    $region5: #{tpu_custom_call.1} parent=1 // pred_fallthru
      _
    // Predicated region
    $region6: #{tpu_custom_call.1} parent=1 // pred_check
      _
    $region7: #{tpu_custom_call.1} parent=1 // pred_check_branch
      %18 = sbr.rel (0) target = $region9
    $region8: #{tpu_custom_call.1} parent=1 // pred_region
      _
    $region9: #{tpu_custom_call.1} parent=1 // pred_fallthru
      _
    // Predicated region
    $region10: #{tpu_custom_call.1} parent=1 // pred_check
      _
    $region11: #{tpu_custom_call.1} parent=1 // pred_check_branch
      %20 = sbr.rel (0) target = $region13
    $region12: #{tpu_custom_call.1} parent=1 // pred_region
      _
    $region13: #{tpu_custom_call.1} parent=1 // pred_fallthru
      _
    // Predicated region
    $region14: #{tpu_custom_call.1} parent=1 // pred_check
      _
    $region15: #{tpu_custom_call.1} parent=1 // pred_check_branch
      %22 = sbr.rel (0) target = $region17
    $region16: #{tpu_custom_call.1} parent=1 // pred_region
      %s24 = ssub.s32 12288, 12288
      %25 = vsyncadd [#allocation3], %s24
      %s26 = sshll.u32 [#allocation2], 4
      %s27 = int_to_ptr.vmem [resolvable:$true] %s26
      %32 = dma.hbm_to_vmem [thread:$0]  %s3, 12288, %s27, [#allocation3], 384, 384, 24
    $region17: #{tpu_custom_call.1} parent=1 // pred_fallthru
      _
    // Predicated region
    $region18: #{tpu_custom_call.1} parent=1 // pred_check
      _
    $region19: #{tpu_custom_call.1} parent=1 // pred_check_branch
      %34 = sbr.rel (0) target = $region21
    $region20: #{tpu_custom_call.1} parent=1 // pred_region
      _
    $region21: #{tpu_custom_call.1} parent=1 // pred_fallthru
      _
    // Predicated region
    $region22: #{tpu_custom_call.1} parent=1 // pred_check
      _
    $region23: #{tpu_custom_call.1} parent=1 // pred_check_branch
      %36 = sbr.rel (0) target = $region25
    $region24: #{tpu_custom_call.1} parent=1 // pred_region
      %s38 = ssub.s32 6144, 6144
      %39 = vsyncadd [#allocation6], %s38
      %s40 = sshll.u32 [#allocation5], 4
      %s41 = int_to_ptr.vmem [resolvable:$true] %s40
      %46 = dma.hbm_to_vmem [thread:$0]  %s5, 6144, %s41, [#allocation6], 128, 128, 8
    $region25: #{tpu_custom_call.1} parent=1 // pred_fallthru
      _
    // Predicated region
    $region26: #{tpu_custom_call.1} parent=1 // pred_check
      _
    $region27: #{tpu_custom_call.1} parent=1 // pred_check_branch
      %48 = sbr.rel (0) target = $region29
    $region28: #{tpu_custom_call.1} parent=1 // pred_region
      _
    $region29: #{tpu_custom_call.1} parent=1 // pred_fallthru
      _
    // Predicated region
    $region30: #{tpu_custom_call.1} parent=1 // pred_check
      _
    $region31: #{tpu_custom_call.1} parent=1 // pred_check_branch
      %50 = sbr.rel (0) target = $region33
    $region32: #{tpu_custom_call.1} parent=1 // pred_region
      %51 = dma.done [#allocation3], 12288
    $region33: #{tpu_custom_call.1} parent=1 // pred_fallthru
      _
    // Predicated region
    $region34: #{tpu_custom_call.1} parent=1 // pred_check
      _
    $region35: #{tpu_custom_call.1} parent=1 // pred_check_branch
      %53 = sbr.rel (0) target = $region37
    $region36: #{tpu_custom_call.1} parent=1 // pred_region
      %54 = dma.done [#allocation6], 6144
    $region37: #{tpu_custom_call.1} parent=1 // pred_fallthru
      _
    %v55 = vld [vmem:[%s0] sm:$0xff]
    %v56 = vld [vmem:[%s1] sm:$0xf]
    %58 = vset.pattern.permute.xlu0 0
    %59 = vperm.xlu0 %58, %v55
    %v60 = vpop.permute.xlu0 %59
    %v63 = vlaneseq
    %v64 = vshrl.u32 %v63, 7
    %v65 = vsub.s32 0, %v64
    %v66 = vrot.slane %v56, %v65
    %v67 = vlaneseq
    %v68 = vshrl.u32 %v67, 7
    %v69 = vsub.s32 2, %v68
    %v70 = vrot.slane %v56, %v69
    %v73 = vlaneseq
    %v74 = vshrl.u32 %v73, 7
    %v75 = vsub.s32 0, %v74
    %v76 = vrot.slane %v66, %v75
    %v77 = vlaneseq
    %v78 = vshrl.u32 %v77, 7
    %v79 = vsub.s32 0, %v78
    %v80 = vrot.slane %v70, %v79
    %v81 = vmul.f32 %v60, %v76
    %v82 = vmul.f32 %v60, %v80
    %83 = vset.pattern.permute.xlu0 1
    %84 = vperm.xlu0 %83, %v55
    %v85 = vpop.permute.xlu0 %84
    %v87 = vlaneseq
    %v88 = vshrl.u32 %v87, 7
    %v89 = vsub.s32 1, %v88
    %v90 = vrot.slane %v56, %v89
    %v91 = vlaneseq
    %v92 = vshrl.u32 %v91, 7
    %v93 = vsub.s32 3, %v92
    %v94 = vrot.slane %v56, %v93
    %v97 = vlaneseq
    %v98 = vshrl.u32 %v97, 7
    %v99 = vsub.s32 1, %v98
    %v100 = vrot.slane %v90, %v99
    %v101 = vlaneseq
    %v102 = vshrl.u32 %v101, 7
    %v103 = vsub.s32 1, %v102
    %v104 = vrot.slane %v94, %v103
    %v105 = vmul.f32 %v85, %v100
    %v106 = vmul.f32 %v85, %v104
    %v107 = vadd.f32 %v81, %v105
    %v108 = vadd.f32 %v82, %v106
    %v109 = vld [vmem:[%s2] sm:$0x3]
    %v111 = vlaneseq
    %v112 = vshrl.u32 %v111, 7
    %v113 = vsub.s32 0, %v112
    %v114 = vrot.slane %v109, %v113
    %v115 = vlaneseq
    %v116 = vshrl.u32 %v115, 7
    %v117 = vsub.s32 1, %v116
    %v118 = vrot.slane %v109, %v117
    %v121 = vadd.f32 %v107, %v114
    %v122 = vadd.f32 %v108, %v118
    %v123 = vmax.f32 %v121, 0.0
    %v124 = vmax.f32 %v122, 0.0
    %v125 = vld [vmem:[#allocation2] sm:$0xff]
    %v126 = vld [vmem:[#allocation2 + $0x8] sm:$0xff]
    %v127 = vld [vmem:[#allocation2 + $0x10] sm:$0xff]
    %v128 = vld [vmem:[#allocation2 + $0x18] sm:$0xff]
    %v129 = vld [vmem:[#allocation2 + $0x20] sm:$0xff]
    %v130 = vld [vmem:[#allocation2 + $0x28] sm:$0xff]
    %v131 = vld [vmem:[#allocation2 + $0x30] sm:$0xff]
    %v132 = vld [vmem:[#allocation2 + $0x38] sm:$0xff]
    %v133 = vld [vmem:[#allocation2 + $0x40] sm:$0xff]
    %v134 = vld [vmem:[#allocation2 + $0x48] sm:$0xff]
    %v135 = vld [vmem:[#allocation2 + $0x50] sm:$0xff]
    %v136 = vld [vmem:[#allocation2 + $0x58] sm:$0xff]
    %v137 = vld [vmem:[#allocation2 + $0x60] sm:$0xff]
    %v138 = vld [vmem:[#allocation2 + $0x68] sm:$0xff]
    %v139 = vld [vmem:[#allocation2 + $0x70] sm:$0xff]
    %v140 = vld [vmem:[#allocation2 + $0x78] sm:$0xff]
    %v141 = vld [vmem:[#allocation2 + $0x80] sm:$0xff]
    %v142 = vld [vmem:[#allocation2 + $0x88] sm:$0xff]
    %v143 = vld [vmem:[#allocation2 + $0x90] sm:$0xff]
    %v144 = vld [vmem:[#allocation2 + $0x98] sm:$0xff]
    %v145 = vld [vmem:[#allocation2 + $0xa0] sm:$0xff]
    %v146 = vld [vmem:[#allocation2 + $0xa8] sm:$0xff]
    %v147 = vld [vmem:[#allocation2 + $0xb0] sm:$0xff]
    %v148 = vld [vmem:[#allocation2 + $0xb8] sm:$0xff]
    %v149 = vld [vmem:[#allocation2 + $0xc0] sm:$0xff]
    %v150 = vld [vmem:[#allocation2 + $0xc8] sm:$0xff]
    %v151 = vld [vmem:[#allocation2 + $0xd0] sm:$0xff]
    %v152 = vld [vmem:[#allocation2 + $0xd8] sm:$0xff]
    %v153 = vld [vmem:[#allocation2 + $0xe0] sm:$0xff]
    %v154 = vld [vmem:[#allocation2 + $0xe8] sm:$0xff]
    %v155 = vld [vmem:[#allocation2 + $0xf0] sm:$0xff]
    %v156 = vld [vmem:[#allocation2 + $0xf8] sm:$0xff]
    %v157 = vld [vmem:[#allocation2 + $0x100] sm:$0xff]
    %v158 = vld [vmem:[#allocation2 + $0x108] sm:$0xff]
    %v159 = vld [vmem:[#allocation2 + $0x110] sm:$0xff]
    %v160 = vld [vmem:[#allocation2 + $0x118] sm:$0xff]
    %v161 = vld [vmem:[#allocation2 + $0x120] sm:$0xff]
    %v162 = vld [vmem:[#allocation2 + $0x128] sm:$0xff]
    %v163 = vld [vmem:[#allocation2 + $0x130] sm:$0xff]
    %v164 = vld [vmem:[#allocation2 + $0x138] sm:$0xff]
    %v165 = vld [vmem:[#allocation2 + $0x140] sm:$0xff]
    %v166 = vld [vmem:[#allocation2 + $0x148] sm:$0xff]
    %v167 = vld [vmem:[#allocation2 + $0x150] sm:$0xff]
    %v168 = vld [vmem:[#allocation2 + $0x158] sm:$0xff]
    %v169 = vld [vmem:[#allocation2 + $0x160] sm:$0xff]
    %v170 = vld [vmem:[#allocation2 + $0x168] sm:$0xff]
    %v171 = vld [vmem:[#allocation2 + $0x170] sm:$0xff]
    %v172 = vld [vmem:[#allocation2 + $0x178] sm:$0xff]
    %v173 = vld [vmem:[#allocation2 + $0x180] sm:$0xff]
    %v174 = vld [vmem:[#allocation2 + $0x188] sm:$0xff]
    %v175 = vld [vmem:[#allocation2 + $0x190] sm:$0xff]
    %v176 = vld [vmem:[#allocation2 + $0x198] sm:$0xff]
    %v177 = vld [vmem:[#allocation2 + $0x1a0] sm:$0xff]
    %v178 = vld [vmem:[#allocation2 + $0x1a8] sm:$0xff]
    %v179 = vld [vmem:[#allocation2 + $0x1b0] sm:$0xff]
    %v180 = vld [vmem:[#allocation2 + $0x1b8] sm:$0xff]
    %v181 = vld [vmem:[#allocation2 + $0x1c0] sm:$0xff]
    %v182 = vld [vmem:[#allocation2 + $0x1c8] sm:$0xff]
    %v183 = vld [vmem:[#allocation2 + $0x1d0] sm:$0xff]
    %v184 = vld [vmem:[#allocation2 + $0x1d8] sm:$0xff]
    %v185 = vld [vmem:[#allocation2 + $0x1e0] sm:$0xff]
    %v186 = vld [vmem:[#allocation2 + $0x1e8] sm:$0xff]
    %v187 = vld [vmem:[#allocation2 + $0x1f0] sm:$0xff]
    %v188 = vld [vmem:[#allocation2 + $0x1f8] sm:$0xff]
    %v189 = vld [vmem:[#allocation2 + $0x200] sm:$0xff]
    %v190 = vld [vmem:[#allocation2 + $0x208] sm:$0xff]
    %v191 = vld [vmem:[#allocation2 + $0x210] sm:$0xff]
    %v192 = vld [vmem:[#allocation2 + $0x218] sm:$0xff]
    %v193 = vld [vmem:[#allocation2 + $0x220] sm:$0xff]
    %v194 = vld [vmem:[#allocation2 + $0x228] sm:$0xff]
    %v195 = vld [vmem:[#allocation2 + $0x230] sm:$0xff]
    %v196 = vld [vmem:[#allocation2 + $0x238] sm:$0xff]
    %v197 = vld [vmem:[#allocation2 + $0x240] sm:$0xff]
    %v198 = vld [vmem:[#allocation2 + $0x248] sm:$0xff]
    %v199 = vld [vmem:[#allocation2 + $0x250] sm:$0xff]
    %v200 = vld [vmem:[#allocation2 + $0x258] sm:$0xff]
    %v201 = vld [vmem:[#allocation2 + $0x260] sm:$0xff]
    %v202 = vld [vmem:[#allocation2 + $0x268] sm:$0xff]
    %v203 = vld [vmem:[#allocation2 + $0x270] sm:$0xff]
    %v204 = vld [vmem:[#allocation2 + $0x278] sm:$0xff]
    %v205 = vld [vmem:[#allocation2 + $0x280] sm:$0xff]
    %v206 = vld [vmem:[#allocation2 + $0x288] sm:$0xff]
    %v207 = vld [vmem:[#allocation2 + $0x290] sm:$0xff]
    %v208 = vld [vmem:[#allocation2 + $0x298] sm:$0xff]
    %v209 = vld [vmem:[#allocation2 + $0x2a0] sm:$0xff]
    %v210 = vld [vmem:[#allocation2 + $0x2a8] sm:$0xff]
    %v211 = vld [vmem:[#allocation2 + $0x2b0] sm:$0xff]
    %v212 = vld [vmem:[#allocation2 + $0x2b8] sm:$0xff]
    %v213 = vld [vmem:[#allocation2 + $0x2c0] sm:$0xff]
    %v214 = vld [vmem:[#allocation2 + $0x2c8] sm:$0xff]
    %v215 = vld [vmem:[#allocation2 + $0x2d0] sm:$0xff]
    %v216 = vld [vmem:[#allocation2 + $0x2d8] sm:$0xff]
    %v217 = vld [vmem:[#allocation2 + $0x2e0] sm:$0xff]
    %v218 = vld [vmem:[#allocation2 + $0x2e8] sm:$0xff]
    %v219 = vld [vmem:[#allocation2 + $0x2f0] sm:$0xff]
    %v220 = vld [vmem:[#allocation2 + $0x2f8] sm:$0xff]
    %v221 = vld [vmem:[%s4] sm:$0x7]
    %v223 = vlaneseq
    %v224 = vshrl.u32 %v223, 7
    %v225 = vsub.s32 0, %v224
    %v226 = vrot.slane %v221, %v225
    %v227 = vlaneseq
    %v228 = vshrl.u32 %v227, 7
    %v229 = vsub.s32 1, %v228
    %v230 = vrot.slane %v221, %v229
    %v231 = vlaneseq
    %v232 = vshrl.u32 %v231, 7
    %v233 = vsub.s32 2, %v232
    %v234 = vrot.slane %v221, %v233
    %238 = vmatprep.subr.mxu0 %v126
    %239 = vmatpush1.msra.mxu0 %v125
    %240 = vmatprep.subr.mxu0 %v129
    %241 = vmatpush1.msra.mxu0 %v128
    %242 = vmatprep.subr.mxu0 %v132
    %243 = vmatpush1.msra.mxu0 %v131
    %244 = vmatprep.subr.mxu0 %v135
    %245 = vmatpush1.msra.mxu0 %v134
    %246 = vmatprep.subr.mxu0 %v138
    %247 = vmatpush1.msra.mxu0 %v137
    %248 = vmatprep.subr.mxu0 %v141
    %249 = vmatpush1.msra.mxu0 %v140
    %250 = vmatprep.subr.mxu0 %v144
    %251 = vmatpush1.msra.mxu0 %v143
    %252 = vmatprep.subr.mxu0 %v147
    %253 = vmatpush1.msra.mxu0 %v146
    %254 = vmatprep.subr.mxu0 %v150
    %255 = vmatpush1.msra.mxu0 %v149
    %256 = vmatprep.subr.mxu0 %v153
    %257 = vmatpush1.msra.mxu0 %v152
    %258 = vmatprep.subr.mxu0 %v156
    %259 = vmatpush1.msra.mxu0 %v155
    %260 = vmatprep.subr.mxu0 %v159
    %261 = vmatpush1.msra.mxu0 %v158
    %262 = vmatprep.subr.mxu0 %v162
    %263 = vmatpush1.msra.mxu0 %v161
    %264 = vmatprep.subr.mxu0 %v165
    %265 = vmatpush1.msra.mxu0 %v164
    %266 = vmatprep.subr.mxu0 %v168
    %267 = vmatpush1.msra.mxu0 %v167
    %268 = vmatprep.subr.mxu0 %v171
    %269 = vmatpush1.msra.mxu0 %v170
    %270 = vmatprep.subr.mxu0 %v174
    %271 = vmatpush1.msra.mxu0 %v173
    %272 = vmatprep.subr.mxu0 %v177
    %273 = vmatpush1.msra.mxu0 %v176
    %274 = vmatprep.subr.mxu0 %v180
    %275 = vmatpush1.msra.mxu0 %v179
    %276 = vmatprep.subr.mxu0 %v183
    %277 = vmatpush1.msra.mxu0 %v182
    %278 = vmatprep.subr.mxu0 %v186
    %279 = vmatpush1.msra.mxu0 %v185
    %280 = vmatprep.subr.mxu0 %v189
    %281 = vmatpush1.msra.mxu0 %v188
    %282 = vmatprep.subr.mxu0 %v192
    %283 = vmatpush1.msra.mxu0 %v191
    %284 = vmatprep.subr.mxu0 %v195
    %285 = vmatpush1.msra.mxu0 %v194
    %286 = vmatprep.subr.mxu0 %v198
    %287 = vmatpush1.msra.mxu0 %v197
    %288 = vmatprep.subr.mxu0 %v201
    %289 = vmatpush1.msra.mxu0 %v200
    %290 = vmatprep.subr.mxu0 %v204
    %291 = vmatpush1.msra.mxu0 %v203
    %292 = vmatprep.subr.mxu0 %v207
    %293 = vmatpush1.msra.mxu0 %v206
    %294 = vmatprep.subr.mxu0 %v210
    %295 = vmatpush1.msra.mxu0 %v209
    %296 = vmatprep.subr.mxu0 %v213
    %297 = vmatpush1.msra.mxu0 %v212
    %298 = vmatprep.subr.mxu0 %v216
    %299 = vmatpush1.msra.mxu0 %v215
    %300 = vmatprep.subr.mxu0 %v219
    %301 = vmatpush1.msra.mxu0 %v218
    %302 = vmatprep.mubr.f32.mxu0 %v124
    %303 = vmatmul.mubr.f32.gmra.mrb[0].mxu0 %v123
    %v304 = vpop.f32.mrb[0].mxu0
    %v305 = vadd.f32 %v226, %v304
    %v306 = vpop.f32.mrb[0].mxu0
    %v307 = vadd.f32 %v230, %v306
    %308 = vdwg.mxu0
    %309 = vmatprep.subr.mxu0 0.0
    %310 = vmatpush1.msra.mxu0 %v127
    %311 = vmatprep.subr.mxu0 0.0
    %312 = vmatpush1.msra.mxu0 %v130
    %313 = vmatprep.subr.mxu0 0.0
    %314 = vmatpush1.msra.mxu0 %v133
    %315 = vmatprep.subr.mxu0 0.0
    %316 = vmatpush1.msra.mxu0 %v136
    %317 = vmatprep.subr.mxu0 0.0
    %318 = vmatpush1.msra.mxu0 %v139
    %319 = vmatprep.subr.mxu0 0.0
    %320 = vmatpush1.msra.mxu0 %v142
    %321 = vmatprep.subr.mxu0 0.0
    %322 = vmatpush1.msra.mxu0 %v145
    %323 = vmatprep.subr.mxu0 0.0
    %324 = vmatpush1.msra.mxu0 %v148
    %325 = vmatprep.subr.mxu0 0.0
    %326 = vmatpush1.msra.mxu0 %v151
    %327 = vmatprep.subr.mxu0 0.0
    %328 = vmatpush1.msra.mxu0 %v154
    %329 = vmatprep.subr.mxu0 0.0
    %330 = vmatpush1.msra.mxu0 %v157
    %331 = vmatprep.subr.mxu0 0.0
    %332 = vmatpush1.msra.mxu0 %v160
    %333 = vmatprep.subr.mxu0 0.0
    %334 = vmatpush1.msra.mxu0 %v163
    %335 = vmatprep.subr.mxu0 0.0
    %336 = vmatpush1.msra.mxu0 %v166
    %337 = vmatprep.subr.mxu0 0.0
    %338 = vmatpush1.msra.mxu0 %v169
    %339 = vmatprep.subr.mxu0 0.0
    %340 = vmatpush1.msra.mxu0 %v172
    %341 = vmatprep.subr.mxu0 0.0
    %342 = vmatpush1.msra.mxu0 %v175
    %343 = vmatprep.subr.mxu0 0.0
    %344 = vmatpush1.msra.mxu0 %v178
    %345 = vmatprep.subr.mxu0 0.0
    %346 = vmatpush1.msra.mxu0 %v181
    %347 = vmatprep.subr.mxu0 0.0
    %348 = vmatpush1.msra.mxu0 %v184
    %349 = vmatprep.subr.mxu0 0.0
    %350 = vmatpush1.msra.mxu0 %v187
    %351 = vmatprep.subr.mxu0 0.0
    %352 = vmatpush1.msra.mxu0 %v190
    %353 = vmatprep.subr.mxu0 0.0
    %354 = vmatpush1.msra.mxu0 %v193
    %355 = vmatprep.subr.mxu0 0.0
    %356 = vmatpush1.msra.mxu0 %v196
    %357 = vmatprep.subr.mxu0 0.0
    %358 = vmatpush1.msra.mxu0 %v199
    %359 = vmatprep.subr.mxu0 0.0
    %360 = vmatpush1.msra.mxu0 %v202
    %361 = vmatprep.subr.mxu0 0.0
    %362 = vmatpush1.msra.mxu0 %v205
    %363 = vmatprep.subr.mxu0 0.0
    %364 = vmatpush1.msra.mxu0 %v208
    %365 = vmatprep.subr.mxu0 0.0
    %366 = vmatpush1.msra.mxu0 %v211
    %367 = vmatprep.subr.mxu0 0.0
    %368 = vmatpush1.msra.mxu0 %v214
    %369 = vmatprep.subr.mxu0 0.0
    %370 = vmatpush1.msra.mxu0 %v217
    %371 = vmatprep.subr.mxu0 0.0
    %372 = vmatpush1.msra.mxu0 %v220
    %373 = vmatprep.mubr.f32.mxu0 %v124
    %374 = vmatmul.mubr.f32.gmra.mrb[0].mxu0 %v123
    %v375 = vpop.f32.mrb[0].mxu0
    %v376 = vadd.f32 %v234, %v375
    %v377 = vpop.f32.mrb[0].mxu0
    %378 = vdwg.mxu0
    %v379 = vmax.f32 %v305, 0.0
    %v380 = vmax.f32 %v307, 0.0
    %v381 = vmax.f32 %v376, 0.0
    %v382 = vld [vmem:[#allocation5] sm:$0xff]
    %v383 = vld [vmem:[#allocation5 + $0x8] sm:$0xff]
    %v384 = vld [vmem:[#allocation5 + $0x10] sm:$0xff]
    %v385 = vld [vmem:[#allocation5 + $0x18] sm:$0xff]
    %v386 = vld [vmem:[#allocation5 + $0x20] sm:$0xff]
    %v387 = vld [vmem:[#allocation5 + $0x28] sm:$0xff]
    %v388 = vld [vmem:[#allocation5 + $0x30] sm:$0xff]
    %v389 = vld [vmem:[#allocation5 + $0x38] sm:$0xff]
    %v390 = vld [vmem:[#allocation5 + $0x40] sm:$0xff]
    %v391 = vld [vmem:[#allocation5 + $0x48] sm:$0xff]
    %v392 = vld [vmem:[#allocation5 + $0x50] sm:$0xff]
    %v393 = vld [vmem:[#allocation5 + $0x58] sm:$0xff]
    %v394 = vld [vmem:[#allocation5 + $0x60] sm:$0xff]
    %v395 = vld [vmem:[#allocation5 + $0x68] sm:$0xff]
    %v396 = vld [vmem:[#allocation5 + $0x70] sm:$0xff]
    %v397 = vld [vmem:[#allocation5 + $0x78] sm:$0xff]
    %v398 = vld [vmem:[#allocation5 + $0x80] sm:$0xff]
    %v399 = vld [vmem:[#allocation5 + $0x88] sm:$0xff]
    %v400 = vld [vmem:[#allocation5 + $0x90] sm:$0xff]
    %v401 = vld [vmem:[#allocation5 + $0x98] sm:$0xff]
    %v402 = vld [vmem:[#allocation5 + $0xa0] sm:$0xff]
    %v403 = vld [vmem:[#allocation5 + $0xa8] sm:$0xff]
    %v404 = vld [vmem:[#allocation5 + $0xb0] sm:$0xff]
    %v405 = vld [vmem:[#allocation5 + $0xb8] sm:$0xff]
    %v406 = vld [vmem:[#allocation5 + $0xc0] sm:$0xff]
    %v407 = vld [vmem:[#allocation5 + $0xc8] sm:$0xff]
    %v408 = vld [vmem:[#allocation5 + $0xd0] sm:$0xff]
    %v409 = vld [vmem:[#allocation5 + $0xd8] sm:$0xff]
    %v410 = vld [vmem:[#allocation5 + $0xe0] sm:$0xff]
    %v411 = vld [vmem:[#allocation5 + $0xe8] sm:$0xff]
    %v412 = vld [vmem:[#allocation5 + $0xf0] sm:$0xff]
    %v413 = vld [vmem:[#allocation5 + $0xf8] sm:$0xff]
    %v414 = vld [vmem:[#allocation5 + $0x100] sm:$0xff]
    %v415 = vld [vmem:[#allocation5 + $0x108] sm:$0xff]
    %v416 = vld [vmem:[#allocation5 + $0x110] sm:$0xff]
    %v417 = vld [vmem:[#allocation5 + $0x118] sm:$0xff]
    %v418 = vld [vmem:[#allocation5 + $0x120] sm:$0xff]
    %v419 = vld [vmem:[#allocation5 + $0x128] sm:$0xff]
    %v420 = vld [vmem:[#allocation5 + $0x130] sm:$0xff]
    %v421 = vld [vmem:[#allocation5 + $0x138] sm:$0xff]
    %v422 = vld [vmem:[#allocation5 + $0x140] sm:$0xff]
    %v423 = vld [vmem:[#allocation5 + $0x148] sm:$0xff]
    %v424 = vld [vmem:[#allocation5 + $0x150] sm:$0xff]
    %v425 = vld [vmem:[#allocation5 + $0x158] sm:$0xff]
    %v426 = vld [vmem:[#allocation5 + $0x160] sm:$0xff]
    %v427 = vld [vmem:[#allocation5 + $0x168] sm:$0xff]
    %v428 = vld [vmem:[#allocation5 + $0x170] sm:$0xff]
    %v429 = vld [vmem:[#allocation5 + $0x178] sm:$0xff]
    %v430 = vld [vmem:[%s6] sm:$0x1]
    %v432 = vlaneseq
    %v433 = vshrl.u32 %v432, 7
    %v434 = vsub.s32 0, %v433
    %v435 = vrot.slane %v430, %v434
    %437 = vmatprep.subr.mxu0 0.0
    %438 = vmatpush1.msra.mxu0 %v382
    %439 = vmatprep.subr.mxu0 0.0
    %440 = vmatpush1.msra.mxu0 %v383
    %441 = vmatprep.subr.mxu0 0.0
    %442 = vmatpush1.msra.mxu0 %v384
    %443 = vmatprep.subr.mxu0 0.0
    %444 = vmatpush1.msra.mxu0 %v385
    %445 = vmatprep.subr.mxu0 0.0
    %446 = vmatpush1.msra.mxu0 %v386
    %447 = vmatprep.subr.mxu0 0.0
    %448 = vmatpush1.msra.mxu0 %v387
    %449 = vmatprep.subr.mxu0 0.0
    %450 = vmatpush1.msra.mxu0 %v388
    %451 = vmatprep.subr.mxu0 0.0
    %452 = vmatpush1.msra.mxu0 %v389
    %453 = vmatprep.subr.mxu0 0.0
    %454 = vmatpush1.msra.mxu0 %v390
    %455 = vmatprep.subr.mxu0 0.0
    %456 = vmatpush1.msra.mxu0 %v391
    %457 = vmatprep.subr.mxu0 0.0
    %458 = vmatpush1.msra.mxu0 %v392
    %459 = vmatprep.subr.mxu0 0.0
    %460 = vmatpush1.msra.mxu0 %v393
    %461 = vmatprep.subr.mxu0 0.0
    %462 = vmatpush1.msra.mxu0 %v394
    %463 = vmatprep.subr.mxu0 0.0
    %464 = vmatpush1.msra.mxu0 %v395
    %465 = vmatprep.subr.mxu0 0.0
    %466 = vmatpush1.msra.mxu0 %v396
    %467 = vmatprep.subr.mxu0 0.0
    %468 = vmatpush1.msra.mxu0 %v397
    %469 = vmatprep.subr.mxu0 0.0
    %470 = vmatpush1.msra.mxu0 %v398
    %471 = vmatprep.subr.mxu0 0.0
    %472 = vmatpush1.msra.mxu0 %v399
    %473 = vmatprep.subr.mxu0 0.0
    %474 = vmatpush1.msra.mxu0 %v400
    %475 = vmatprep.subr.mxu0 0.0
    %476 = vmatpush1.msra.mxu0 %v401
    %477 = vmatprep.subr.mxu0 0.0
    %478 = vmatpush1.msra.mxu0 %v402
    %479 = vmatprep.subr.mxu0 0.0
    %480 = vmatpush1.msra.mxu0 %v403
    %481 = vmatprep.subr.mxu0 0.0
    %482 = vmatpush1.msra.mxu0 %v404
    %483 = vmatprep.subr.mxu0 0.0
    %484 = vmatpush1.msra.mxu0 %v405
    %485 = vmatprep.subr.mxu0 0.0
    %486 = vmatpush1.msra.mxu0 %v406
    %487 = vmatprep.subr.mxu0 0.0
    %488 = vmatpush1.msra.mxu0 %v407
    %489 = vmatprep.subr.mxu0 0.0
    %490 = vmatpush1.msra.mxu0 %v408
    %491 = vmatprep.subr.mxu0 0.0
    %492 = vmatpush1.msra.mxu0 %v409
    %493 = vmatprep.subr.mxu0 0.0
    %494 = vmatpush1.msra.mxu0 %v410
    %495 = vmatprep.subr.mxu0 0.0
    %496 = vmatpush1.msra.mxu0 %v411
    %497 = vmatprep.subr.mxu0 0.0
    %498 = vmatpush1.msra.mxu0 %v412
    %499 = vmatprep.subr.mxu0 0.0
    %500 = vmatpush1.msra.mxu0 %v413
    %501 = vmatprep.mubr.f32.mxu0 %v380
    %502 = vmatmul.mubr.f32.gmra.mrb[0].mxu0 %v379
    %v503 = vpop.f32.mrb[0].mxu0
    %v504 = vadd.f32 %v435, %v503
    %v505 = vpop.f32.mrb[0].mxu0
    %506 = vdwg.mxu0
    %507 = vmatprep.subr.mxu0 0.0
    %508 = vmatpush1.msra.mxu0 %v414
    %509 = vmatprep.subr.mxu0 0.0
    %510 = vmatpush1.msra.mxu0 %v415
    %511 = vmatprep.subr.mxu0 0.0
    %512 = vmatpush1.msra.mxu0 %v416
    %513 = vmatprep.subr.mxu0 0.0
    %514 = vmatpush1.msra.mxu0 %v417
    %515 = vmatprep.subr.mxu0 0.0
    %516 = vmatpush1.msra.mxu0 %v418
    %517 = vmatprep.subr.mxu0 0.0
    %518 = vmatpush1.msra.mxu0 %v419
    %519 = vmatprep.subr.mxu0 0.0
    %520 = vmatpush1.msra.mxu0 %v420
    %521 = vmatprep.subr.mxu0 0.0
    %522 = vmatpush1.msra.mxu0 %v421
    %523 = vmatprep.subr.mxu0 0.0
    %524 = vmatpush1.msra.mxu0 %v422
    %525 = vmatprep.subr.mxu0 0.0
    %526 = vmatpush1.msra.mxu0 %v423
    %527 = vmatprep.subr.mxu0 0.0
    %528 = vmatpush1.msra.mxu0 %v424
    %529 = vmatprep.subr.mxu0 0.0
    %530 = vmatpush1.msra.mxu0 %v425
    %531 = vmatprep.subr.mxu0 0.0
    %532 = vmatpush1.msra.mxu0 %v426
    %533 = vmatprep.subr.mxu0 0.0
    %534 = vmatpush1.msra.mxu0 %v427
    %535 = vmatprep.subr.mxu0 0.0
    %536 = vmatpush1.msra.mxu0 %v428
    %537 = vmatprep.subr.mxu0 0.0
    %538 = vmatpush1.msra.mxu0 %v429
    %539 = vmatprep.subr.mxu0 0.0
    %540 = vmatpush1.msra.mxu0 0.0
    %541 = vmatprep.subr.mxu0 0.0
    %542 = vmatpush1.msra.mxu0 0.0
    %543 = vmatprep.subr.mxu0 0.0
    %544 = vmatpush1.msra.mxu0 0.0
    %545 = vmatprep.subr.mxu0 0.0
    %546 = vmatpush1.msra.mxu0 0.0
    %547 = vmatprep.subr.mxu0 0.0
    %548 = vmatpush1.msra.mxu0 0.0
    %549 = vmatprep.subr.mxu0 0.0
    %550 = vmatpush1.msra.mxu0 0.0
    %551 = vmatprep.subr.mxu0 0.0
    %552 = vmatpush1.msra.mxu0 0.0
    %553 = vmatprep.subr.mxu0 0.0
    %554 = vmatpush1.msra.mxu0 0.0
    %555 = vmatprep.subr.mxu0 0.0
    %556 = vmatpush1.msra.mxu0 0.0
    %557 = vmatprep.subr.mxu0 0.0
    %558 = vmatpush1.msra.mxu0 0.0
    %559 = vmatprep.subr.mxu0 0.0
    %560 = vmatpush1.msra.mxu0 0.0
    %561 = vmatprep.subr.mxu0 0.0
    %562 = vmatpush1.msra.mxu0 0.0
    %563 = vmatprep.subr.mxu0 0.0
    %564 = vmatpush1.msra.mxu0 0.0
    %565 = vmatprep.subr.mxu0 0.0
    %566 = vmatpush1.msra.mxu0 0.0
    %567 = vmatprep.subr.mxu0 0.0
    %568 = vmatpush1.msra.mxu0 0.0
    %569 = vmatprep.subr.mxu0 0.0
    %570 = vmatpush1.msra.mxu0 0.0
    %571 = vmatprep.mubr.f32.mxu0 0.0
    %572 = vmatmul.mubr.f32.gmra.mrb[0].mxu0 %v381
    %v573 = vpop.f32.mrb[0].mxu0
    %v574 = vadd.f32 %v504, %v573
    %v575 = vpop.f32.mrb[0].mxu0
    %576 = vdwg.mxu0
    %577 = vst [vmem:[#allocation7] sm:$0xff] %v574
    // Predicated region
    $region38: #{tpu_custom_call.1} parent=1 // pred_check
      _
    $region39: #{tpu_custom_call.1} parent=1 // pred_check_branch
      %579 = sbr.rel (0) target = $region41
    $region40: #{tpu_custom_call.1} parent=1 // pred_region
      %s581 = ssub.s32 128, 128
      %582 = vsyncadd [#allocation4], %s581
      %s584 = sshll.u32 [#allocation7], 4
      %s585 = int_to_ptr.vmem [resolvable:$true] %s584
      %587 = dma.vmem_to_hbm [thread:$0]  %s585, 128, %s7, [#allocation4]
    $region41: #{tpu_custom_call.1} parent=1 // pred_fallthru
      _
    // Predicated region
    $region42: #{tpu_custom_call.1} parent=1 // pred_check
      _
    $region43: #{tpu_custom_call.1} parent=1 // pred_check_branch
      %589 = sbr.rel (0) target = $region45
    $region44: #{tpu_custom_call.1} parent=1 // pred_region
      %590 = dma.done [#allocation4], 128
    $region45: #{tpu_custom_call.1} parent=1 // pred_fallthru
      _
    %591 = vsyncpa [#allocation3], 1
    %592 = vsyncpa [#allocation6], 1
    %593 = vsyncpa [#allocation4], 1

</llo_original>
